<compile_context>
chip_gen: v5e
topology: v5e:2x2
jax: 0.10.0
libtpu: 0.0.40
codegen_flags: <defaults>
</compile_context>

<pallas_src>
import functools

import jax
import jax.numpy as jnp
from jax.experimental import pallas as pl
from jax.experimental.pallas import tpu as pltpu


# ----------------------------------------------------------------------------
# Pallas kernel: full LSTM recurrence in one invocation, batch-first layout.
# ----------------------------------------------------------------------------
def _lstm_kernel(emb_ref, w_ref, b_ref, h0_ref, c0_ref,
                 out_ref, hT_ref, cT_ref, *, seq_len, hidden_size):
    H = hidden_size
    w = w_ref[...]                      # (2H, 4H) bf16 — loaded once
    b = b_ref[...]                      # (1, 4H)  f32

    h = h0_ref[...]                     # (B, H) f32 carry (stays in vregs)
    c = c0_ref[...]                     # (B, H) f32 carry

    # Statically unrolled recurrence (seq_len is a trace-time constant);
    # all indexing is static, h/c never touch memory between steps.
    for t in range(seq_len):
        x = emb_ref[:, t, :].astype(jnp.bfloat16)                    # (B, H)
        xh = jnp.concatenate([x, h.astype(jnp.bfloat16)], axis=-1)   # (B, 2H)
        # Fused gate matmul on the MXU, f32 accumulation.
        # PyTorch gate order: [i, f, g, o].
        gates = jnp.dot(xh, w, preferred_element_type=jnp.float32) + b
        i_g = jax.nn.sigmoid(gates[:, 0 * H:1 * H])
        f_g = jax.nn.sigmoid(gates[:, 1 * H:2 * H])
        g_g = jnp.tanh(gates[:, 2 * H:3 * H])
        o_g = jax.nn.sigmoid(gates[:, 3 * H:4 * H])
        c = f_g * c + i_g * g_g
        h = o_g * jnp.tanh(c)
        out_ref[:, t, :] = h.astype(out_ref.dtype)

    # Final state written exactly once (not every step).
    hT_ref[...] = h
    cT_ref[...] = c


def lstm_pallas(emb, w_cat, bias, h0, c0):
    """emb: (B, T, H) batch-first embeddings (f32).
    w_cat: (2H, 4H) bf16 fused [W_ih^T; W_hh^T].  Returns (out, hT, cT)."""
    B, T, H = emb.shape
    kernel = functools.partial(_lstm_kernel, seq_len=T, hidden_size=H)
    out, hT, cT = pl.pallas_call(
        kernel,
        out_shape=(
            jax.ShapeDtypeStruct((B, T, H), jnp.float32),
            jax.ShapeDtypeStruct((B, H), jnp.float32),
            jax.ShapeDtypeStruct((B, H), jnp.float32),
        ),
        grid_spec=pltpu.PrefetchScalarGridSpec(
            num_scalar_prefetch=0,
            grid=(1,),
            in_specs=[
                pl.BlockSpec((B, T, H), lambda i: (0, 0, 0)),      # embeddings
                pl.BlockSpec((2 * H, 4 * H), lambda i: (0, 0)),    # fused W
                pl.BlockSpec((1, 4 * H), lambda i: (0, 0)),        # bias
                pl.BlockSpec((B, H), lambda i: (0, 0)),            # h0
                pl.BlockSpec((B, H), lambda i: (0, 0)),            # c0
            ],
            out_specs=[
                pl.BlockSpec((B, T, H), lambda i: (0, 0, 0)),      # outputs
                pl.BlockSpec((B, H), lambda i: (0, 0)),            # h_T
                pl.BlockSpec((B, H), lambda i: (0, 0)),            # c_T
            ],
        ),
        compiler_params=pltpu.CompilerParams(
            dimension_semantics=("arbitrary",)),
    )(emb, w_cat, bias, h0, c0)
    return out, hT, cT


# ----------------------------------------------------------------------------
# Glue reproducing Decoder.forward
# ----------------------------------------------------------------------------
def reshape_state(state):
    h_state, c_state = state
    new_h = jnp.concatenate([h_state[:-1], h_state[1:]], axis=2)
    new_c = jnp.concatenate([c_state[:-1], c_state[1:]], axis=2)
    return (new_h, new_c)


def decoder_forward(params, tgt, dec_state, encoder_outputs, src_lengths):
    # Handle a bidirectional-encoder state exactly like the PyTorch code.
    if dec_state[0].shape[0] == 2:
        dec_state = reshape_state(dec_state)

    # Decoder hidden size must match the (possibly concatenated) state size.
    assert dec_state[0].shape[-1] == params["w_cat"].shape[0] // 2

    # tgt = tgt[:, :-1] if tgt.shape[1] > 1 else tgt
    if tgt.shape[1] > 1:
        tgt = tgt[:, :-1]

    # Embedding lookup (gather is wrapper glue); dropout is identity in eval mode.
    emb = jnp.take(params["embedding"], tgt, axis=0)            # (B, T, H) f32

    h0 = dec_state[0][0]                                        # (B, H)
    c0 = dec_state[1][0]                                        # (B, H)
    outputs, hT, cT = lstm_pallas(
        emb, params["w_cat"], params["bias"], h0, c0)           # (B, T, H)

    # self.attn is None -> skip attention; dropout is identity in eval mode.
    new_state = (hT[None, :, :], cT[None, :, :])
    return outputs, new_state


def init_params(key, tgt_vocab_size, hidden_size, padding_idx):
    H = hidden_size
    k_emb, k_ih, k_hh, k_bih, k_bhh = jax.random.split(key, 5)
    bound = 1.0 / jnp.sqrt(H)

    embedding = jax.random.normal(k_emb, (tgt_vocab_size, H), jnp.float32)
    embedding = embedding.at[padding_idx].set(0.0)   # nn.Embedding padding_idx row

    # PyTorch LSTM params: weight_ih (4H, H), weight_hh (4H, H), two biases (4H,)
    w_ih = jax.random.uniform(k_ih, (4 * H, H), jnp.float32, -bound, bound)
    w_hh = jax.random.uniform(k_hh, (4 * H, H), jnp.float32, -bound, bound)
    b_ih = jax.random.uniform(k_bih, (4 * H,), jnp.float32, -bound, bound)
    b_hh = jax.random.uniform(k_bhh, (4 * H,), jnp.float32, -bound, bound)

    # Fused gate weight: [x, h] @ w_cat == x @ W_ih^T + h @ W_hh^T.
    # bf16 weights (MXU-native); accumulation stays f32 in-kernel.
    w_cat = jnp.concatenate([w_ih.T, w_hh.T], axis=0).astype(jnp.bfloat16)

    return {
        "embedding": embedding,
        "w_cat": w_cat,                         # (2H, 4H) bf16
        "bias": (b_ih + b_hh)[None, :],         # (1, 4H) f32
    }


if __name__ == "__main__":
    key = jax.random.PRNGKey(0)
    B, SEQ, H, V = 2, 8, 32, 50
    padding_idx = 0

    k_p, k_tgt, k_h, k_c, k_enc = jax.random.split(key, 5)
    params = init_params(k_p, V, H, padding_idx)

    tgt = jax.random.randint(k_tgt, (B, SEQ), 0, V, jnp.int32)          # (B, 8)
    dec_state = (
        jax.random.normal(k_h, (1, B, H), jnp.float32),                 # h0
        jax.random.normal(k_c, (1, B, H), jnp.float32),                 # c0
    )
    encoder_outputs = jax.random.normal(k_enc, (B, SEQ, H), jnp.float32)  # unused (attn=None)
    src_lengths = jnp.full((B,), SEQ, jnp.int32)                          # unused (attn=None)

    outputs, new_state = decoder_forward(
        params, tgt, dec_state, encoder_outputs, src_lengths)
    jax.block_until_ready((outputs, new_state))

    assert outputs.shape == (B, SEQ - 1, H)
    assert new_state[0].shape == (1, B, H) and new_state[1].shape == (1, B, H)
    print("KERNEL_OK")
</pallas_src>

<mosaic_0001>
module attributes {stable_mosaic.version = 11 : i64} {
  func.func @_lstm_kernel(%arg0: i32, %arg1: memref<2x7x32xf32, #tpu.memory_space<vmem>>, %arg2: memref<64x128xbf16, #tpu.memory_space<vmem>>, %arg3: memref<1x128xf32, #tpu.memory_space<vmem>>, %arg4: memref<2x32xf32, #tpu.memory_space<vmem>>, %arg5: memref<2x32xf32, #tpu.memory_space<vmem>>, %arg6: memref<2x7x32xf32, #tpu.memory_space<vmem>>, %arg7: memref<2x32xf32, #tpu.memory_space<vmem>>, %arg8: memref<2x32xf32, #tpu.memory_space<vmem>>) attributes {dimension_semantics = [#tpu.dimension_semantics<arbitrary>], iteration_bounds = array<i64: 1>, scalar_prefetch = 0 : i64, scratch_operands = 0 : i64, tpu.core_type = #tpu.core_type<tc>, window_params = [{pipeline_mode = #tpu.pipeline_mode<synchronous>, transform_indices = @transform_0, window_bounds = array<i64: 2, 7, 32>}, {pipeline_mode = #tpu.pipeline_mode<synchronous>, transform_indices = @transform_1, window_bounds = array<i64: 64, 128>}, {pipeline_mode = #tpu.pipeline_mode<synchronous>, transform_indices = @transform_2, window_bounds = array<i64: 1, 128>}, {pipeline_mode = #tpu.pipeline_mode<synchronous>, transform_indices = @transform_3, window_bounds = array<i64: 2, 32>}, {pipeline_mode = #tpu.pipeline_mode<synchronous>, transform_indices = @transform_4, window_bounds = array<i64: 2, 32>}, {pipeline_mode = #tpu.pipeline_mode<synchronous>, transform_indices = @transform_5, window_bounds = array<i64: 2, 7, 32>}, {pipeline_mode = #tpu.pipeline_mode<synchronous>, transform_indices = @transform_6, window_bounds = array<i64: 2, 32>}, {pipeline_mode = #tpu.pipeline_mode<synchronous>, transform_indices = @transform_7, window_bounds = array<i64: 2, 32>}]} {
    %c0 = arith.constant 0 : index
    %c0_0 = arith.constant 0 : index
    %0 = vector.load %arg2[%c0, %c0_0] : memref<64x128xbf16, #tpu.memory_space<vmem>>, vector<64x128xbf16>
    %c0_1 = arith.constant 0 : index
    %c0_2 = arith.constant 0 : index
    %1 = vector.load %arg3[%c0_1, %c0_2] : memref<1x128xf32, #tpu.memory_space<vmem>>, vector<1x128xf32>
    %c0_3 = arith.constant 0 : index
    %c0_4 = arith.constant 0 : index
    %2 = vector.load %arg4[%c0_3, %c0_4] : memref<2x32xf32, #tpu.memory_space<vmem>>, vector<2x32xf32>
    %c0_5 = arith.constant 0 : index
    %c0_6 = arith.constant 0 : index
    %3 = vector.load %arg5[%c0_5, %c0_6] : memref<2x32xf32, #tpu.memory_space<vmem>>, vector<2x32xf32>
    %c0_7 = arith.constant 0 : index
    %c0_8 = arith.constant 0 : index
    %c0_9 = arith.constant 0 : index
    %4 = vector.load %arg1[%c0_7, %c0_8, %c0_9] : memref<2x7x32xf32, #tpu.memory_space<vmem>>, vector<2x1x32xf32>
    %5 = vector.shape_cast %4 : vector<2x1x32xf32> to vector<2x32xf32>
    %6 = arith.truncf %5 : vector<2x32xf32> to vector<2x32xbf16>
    %7 = arith.truncf %2 : vector<2x32xf32> to vector<2x32xbf16>
    %8 = tpu.concatenate %6, %7 in 1 : vector<2x32xbf16>, vector<2x32xbf16> -> vector<2x64xbf16>
    %cst = arith.constant dense<0.000000e+00> : vector<2x128xf32>
    %9 = tpu.matmul %8, %0, %cst {dimension_numbers = #tpu.dot_dimension_numbers<[1], [0], [0], [1], [0, 0, 1, 1], [], []>} : vector<2x64xbf16>, vector<64x128xbf16>, vector<2x128xf32> -> vector<2x128xf32>
    %10 = vector.broadcast %1 : vector<1x128xf32> to vector<2x128xf32>
    %11 = arith.addf %9, %10 : vector<2x128xf32>
    %12 = vector.extract_strided_slice %11 {offsets = [0, 0], sizes = [2, 32], strides = [1, 1]} : vector<2x128xf32> to vector<2x32xf32>
    %13 = arith.negf %12 : vector<2x32xf32>
    %14 = math.exp %13 : vector<2x32xf32>
    %cst_10 = arith.constant 1.000000e+00 : f32
    %15 = vector.broadcast %cst_10 : f32 to vector<2x32xf32>
    %16 = arith.addf %15, %14 : vector<2x32xf32>
    %17 = arith.divf %15, %16 : vector<2x32xf32>
    %18 = vector.extract_strided_slice %11 {offsets = [0, 32], sizes = [2, 32], strides = [1, 1]} : vector<2x128xf32> to vector<2x32xf32>
    %19 = arith.negf %18 : vector<2x32xf32>
    %20 = math.exp %19 : vector<2x32xf32>
    %cst_11 = arith.constant 1.000000e+00 : f32
    %21 = vector.broadcast %cst_11 : f32 to vector<2x32xf32>
    %22 = arith.addf %21, %20 : vector<2x32xf32>
    %23 = arith.divf %21, %22 : vector<2x32xf32>
    %24 = vector.extract_strided_slice %11 {offsets = [0, 64], sizes = [2, 32], strides = [1, 1]} : vector<2x128xf32> to vector<2x32xf32>
    %25 = math.tanh %24 : vector<2x32xf32>
    %26 = vector.extract_strided_slice %11 {offsets = [0, 96], sizes = [2, 32], strides = [1, 1]} : vector<2x128xf32> to vector<2x32xf32>
    %27 = arith.negf %26 : vector<2x32xf32>
    %28 = math.exp %27 : vector<2x32xf32>
    %cst_12 = arith.constant 1.000000e+00 : f32
    %29 = vector.broadcast %cst_12 : f32 to vector<2x32xf32>
    %30 = arith.addf %29, %28 : vector<2x32xf32>
    %31 = arith.divf %29, %30 : vector<2x32xf32>
    %32 = arith.mulf %23, %3 : vector<2x32xf32>
    %33 = arith.mulf %17, %25 : vector<2x32xf32>
    %34 = arith.addf %32, %33 : vector<2x32xf32>
    %35 = math.tanh %34 : vector<2x32xf32>
    %36 = arith.mulf %31, %35 : vector<2x32xf32>
    %c0_13 = arith.constant 0 : index
    %c0_14 = arith.constant 0 : index
    %c0_15 = arith.constant 0 : index
    %37 = vector.load %arg6[%c0_13, %c0_14, %c0_15] : memref<2x7x32xf32, #tpu.memory_space<vmem>>, vector<2x1x32xf32>
    %38 = vector.shape_cast %37 : vector<2x1x32xf32> to vector<2x32xf32>
    %39 = vector.shape_cast %36 : vector<2x32xf32> to vector<2x1x32xf32>
    tpu.vector_store %arg6[%c0_13, %c0_14, %c0_15], %39 {strides = array<i32>} : memref<2x7x32xf32, #tpu.memory_space<vmem>>, vector<2x1x32xf32>,
    %c0_16 = arith.constant 0 : index
    %c1 = arith.constant 1 : index
    %c0_17 = arith.constant 0 : index
    %40 = vector.load %arg1[%c0_16, %c1, %c0_17] : memref<2x7x32xf32, #tpu.memory_space<vmem>>, vector<2x1x32xf32>
    %41 = vector.shape_cast %40 : vector<2x1x32xf32> to vector<2x32xf32>
    %42 = arith.truncf %41 : vector<2x32xf32> to vector<2x32xbf16>
    %43 = arith.truncf %36 : vector<2x32xf32> to vector<2x32xbf16>
    %44 = tpu.concatenate %42, %43 in 1 : vector<2x32xbf16>, vector<2x32xbf16> -> vector<2x64xbf16>
    %cst_18 = arith.constant dense<0.000000e+00> : vector<2x128xf32>
    %45 = tpu.matmul %44, %0, %cst_18 {dimension_numbers = #tpu.dot_dimension_numbers<[1], [0], [0], [1], [0, 0, 1, 1], [], []>} : vector<2x64xbf16>, vector<64x128xbf16>, vector<2x128xf32> -> vector<2x128xf32>
    %46 = vector.broadcast %1 : vector<1x128xf32> to vector<2x128xf32>
    %47 = arith.addf %45, %46 : vector<2x128xf32>
    %48 = vector.extract_strided_slice %47 {offsets = [0, 0], sizes = [2, 32], strides = [1, 1]} : vector<2x128xf32> to vector<2x32xf32>
    %49 = arith.negf %48 : vector<2x32xf32>
    %50 = math.exp %49 : vector<2x32xf32>
    %cst_19 = arith.constant 1.000000e+00 : f32
    %51 = vector.broadcast %cst_19 : f32 to vector<2x32xf32>
    %52 = arith.addf %51, %50 : vector<2x32xf32>
    %53 = arith.divf %51, %52 : vector<2x32xf32>
    %54 = vector.extract_strided_slice %47 {offsets = [0, 32], sizes = [2, 32], strides = [1, 1]} : vector<2x128xf32> to vector<2x32xf32>
    %55 = arith.negf %54 : vector<2x32xf32>
    %56 = math.exp %55 : vector<2x32xf32>
    %cst_20 = arith.constant 1.000000e+00 : f32
    %57 = vector.broadcast %cst_20 : f32 to vector<2x32xf32>
    %58 = arith.addf %57, %56 : vector<2x32xf32>
    %59 = arith.divf %57, %58 : vector<2x32xf32>
    %60 = vector.extract_strided_slice %47 {offsets = [0, 64], sizes = [2, 32], strides = [1, 1]} : vector<2x128xf32> to vector<2x32xf32>
    %61 = math.tanh %60 : vector<2x32xf32>
    %62 = vector.extract_strided_slice %47 {offsets = [0, 96], sizes = [2, 32], strides = [1, 1]} : vector<2x128xf32> to vector<2x32xf32>
    %63 = arith.negf %62 : vector<2x32xf32>
    %64 = math.exp %63 : vector<2x32xf32>
    %cst_21 = arith.constant 1.000000e+00 : f32
    %65 = vector.broadcast %cst_21 : f32 to vector<2x32xf32>
    %66 = arith.addf %65, %64 : vector<2x32xf32>
    %67 = arith.divf %65, %66 : vector<2x32xf32>
    %68 = arith.mulf %59, %34 : vector<2x32xf32>
    %69 = arith.mulf %53, %61 : vector<2x32xf32>
    %70 = arith.addf %68, %69 : vector<2x32xf32>
    %71 = math.tanh %70 : vector<2x32xf32>
    %72 = arith.mulf %67, %71 : vector<2x32xf32>
    %c0_22 = arith.constant 0 : index
    %c1_23 = arith.constant 1 : index
    %c0_24 = arith.constant 0 : index
    %73 = vector.load %arg6[%c0_22, %c1_23, %c0_24] : memref<2x7x32xf32, #tpu.memory_space<vmem>>, vector<2x1x32xf32>
    %74 = vector.shape_cast %73 : vector<2x1x32xf32> to vector<2x32xf32>
    %75 = vector.shape_cast %72 : vector<2x32xf32> to vector<2x1x32xf32>
    tpu.vector_store %arg6[%c0_22, %c1_23, %c0_24], %75 {strides = array<i32>} : memref<2x7x32xf32, #tpu.memory_space<vmem>>, vector<2x1x32xf32>,
    %c0_25 = arith.constant 0 : index
    %c2 = arith.constant 2 : index
    %c0_26 = arith.constant 0 : index
    %76 = vector.load %arg1[%c0_25, %c2, %c0_26] : memref<2x7x32xf32, #tpu.memory_space<vmem>>, vector<2x1x32xf32>
    %77 = vector.shape_cast %76 : vector<2x1x32xf32> to vector<2x32xf32>
    %78 = arith.truncf %77 : vector<2x32xf32> to vector<2x32xbf16>
    %79 = arith.truncf %72 : vector<2x32xf32> to vector<2x32xbf16>
    %80 = tpu.concatenate %78, %79 in 1 : vector<2x32xbf16>, vector<2x32xbf16> -> vector<2x64xbf16>
    %cst_27 = arith.constant dense<0.000000e+00> : vector<2x128xf32>
    %81 = tpu.matmul %80, %0, %cst_27 {dimension_numbers = #tpu.dot_dimension_numbers<[1], [0], [0], [1], [0, 0, 1, 1], [], []>} : vector<2x64xbf16>, vector<64x128xbf16>, vector<2x128xf32> -> vector<2x128xf32>
    %82 = vector.broadcast %1 : vector<1x128xf32> to vector<2x128xf32>
    %83 = arith.addf %81, %82 : vector<2x128xf32>
    %84 = vector.extract_strided_slice %83 {offsets = [0, 0], sizes = [2, 32], strides = [1, 1]} : vector<2x128xf32> to vector<2x32xf32>
    %85 = arith.negf %84 : vector<2x32xf32>
    %86 = math.exp %85 : vector<2x32xf32>
    %cst_28 = arith.constant 1.000000e+00 : f32
    %87 = vector.broadcast %cst_28 : f32 to vector<2x32xf32>
    %88 = arith.addf %87, %86 : vector<2x32xf32>
    %89 = arith.divf %87, %88 : vector<2x32xf32>
    %90 = vector.extract_strided_slice %83 {offsets = [0, 32], sizes = [2, 32], strides = [1, 1]} : vector<2x128xf32> to vector<2x32xf32>
    %91 = arith.negf %90 : vector<2x32xf32>
    %92 = math.exp %91 : vector<2x32xf32>
    %cst_29 = arith.constant 1.000000e+00 : f32
    %93 = vector.broadcast %cst_29 : f32 to vector<2x32xf32>
    %94 = arith.addf %93, %92 : vector<2x32xf32>
    %95 = arith.divf %93, %94 : vector<2x32xf32>
    %96 = vector.extract_strided_slice %83 {offsets = [0, 64], sizes = [2, 32], strides = [1, 1]} : vector<2x128xf32> to vector<2x32xf32>
    %97 = math.tanh %96 : vector<2x32xf32>
    %98 = vector.extract_strided_slice %83 {offsets = [0, 96], sizes = [2, 32], strides = [1, 1]} : vector<2x128xf32> to vector<2x32xf32>
    %99 = arith.negf %98 : vector<2x32xf32>
    %100 = math.exp %99 : vector<2x32xf32>
    %cst_30 = arith.constant 1.000000e+00 : f32
    %101 = vector.broadcast %cst_30 : f32 to vector<2x32xf32>
    %102 = arith.addf %101, %100 : vector<2x32xf32>
    %103 = arith.divf %101, %102 : vector<2x32xf32>
    %104 = arith.mulf %95, %70 : vector<2x32xf32>
    %105 = arith.mulf %89, %97 : vector<2x32xf32>
    %106 = arith.addf %104, %105 : vector<2x32xf32>
    %107 = math.tanh %106 : vector<2x32xf32>
    %108 = arith.mulf %103, %107 : vector<2x32xf32>
    %c0_31 = arith.constant 0 : index
    %c2_32 = arith.constant 2 : index
    %c0_33 = arith.constant 0 : index
    %109 = vector.load %arg6[%c0_31, %c2_32, %c0_33] : memref<2x7x32xf32, #tpu.memory_space<vmem>>, vector<2x1x32xf32>
    %110 = vector.shape_cast %109 : vector<2x1x32xf32> to vector<2x32xf32>
    %111 = vector.shape_cast %108 : vector<2x32xf32> to vector<2x1x32xf32>
    tpu.vector_store %arg6[%c0_31, %c2_32, %c0_33], %111 {strides = array<i32>} : memref<2x7x32xf32, #tpu.memory_space<vmem>>, vector<2x1x32xf32>,
    %c0_34 = arith.constant 0 : index
    %c3 = arith.constant 3 : index
    %c0_35 = arith.constant 0 : index
    %112 = vector.load %arg1[%c0_34, %c3, %c0_35] : memref<2x7x32xf32, #tpu.memory_space<vmem>>, vector<2x1x32xf32>
    %113 = vector.shape_cast %112 : vector<2x1x32xf32> to vector<2x32xf32>
    %114 = arith.truncf %113 : vector<2x32xf32> to vector<2x32xbf16>
    %115 = arith.truncf %108 : vector<2x32xf32> to vector<2x32xbf16>
    %116 = tpu.concatenate %114, %115 in 1 : vector<2x32xbf16>, vector<2x32xbf16> -> vector<2x64xbf16>
    %cst_36 = arith.constant dense<0.000000e+00> : vector<2x128xf32>
    %117 = tpu.matmul %116, %0, %cst_36 {dimension_numbers = #tpu.dot_dimension_numbers<[1], [0], [0], [1], [0, 0, 1, 1], [], []>} : vector<2x64xbf16>, vector<64x128xbf16>, vector<2x128xf32> -> vector<2x128xf32>
    %118 = vector.broadcast %1 : vector<1x128xf32> to vector<2x128xf32>
    %119 = arith.addf %117, %118 : vector<2x128xf32>
    %120 = vector.extract_strided_slice %119 {offsets = [0, 0], sizes = [2, 32], strides = [1, 1]} : vector<2x128xf32> to vector<2x32xf32>
    %121 = arith.negf %120 : vector<2x32xf32>
    %122 = math.exp %121 : vector<2x32xf32>
    %cst_37 = arith.constant 1.000000e+00 : f32
    %123 = vector.broadcast %cst_37 : f32 to vector<2x32xf32>
    %124 = arith.addf %123, %122 : vector<2x32xf32>
    %125 = arith.divf %123, %124 : vector<2x32xf32>
    %126 = vector.extract_strided_slice %119 {offsets = [0, 32], sizes = [2, 32], strides = [1, 1]} : vector<2x128xf32> to vector<2x32xf32>
    %127 = arith.negf %126 : vector<2x32xf32>
    %128 = math.exp %127 : vector<2x32xf32>
    %cst_38 = arith.constant 1.000000e+00 : f32
    %129 = vector.broadcast %cst_38 : f32 to vector<2x32xf32>
    %130 = arith.addf %129, %128 : vector<2x32xf32>
    %131 = arith.divf %129, %130 : vector<2x32xf32>
    %132 = vector.extract_strided_slice %119 {offsets = [0, 64], sizes = [2, 32], strides = [1, 1]} : vector<2x128xf32> to vector<2x32xf32>
    %133 = math.tanh %132 : vector<2x32xf32>
    %134 = vector.extract_strided_slice %119 {offsets = [0, 96], sizes = [2, 32], strides = [1, 1]} : vector<2x128xf32> to vector<2x32xf32>
    %135 = arith.negf %134 : vector<2x32xf32>
    %136 = math.exp %135 : vector<2x32xf32>
    %cst_39 = arith.constant 1.000000e+00 : f32
    %137 = vector.broadcast %cst_39 : f32 to vector<2x32xf32>
    %138 = arith.addf %137, %136 : vector<2x32xf32>
    %139 = arith.divf %137, %138 : vector<2x32xf32>
    %140 = arith.mulf %131, %106 : vector<2x32xf32>
    %141 = arith.mulf %125, %133 : vector<2x32xf32>
    %142 = arith.addf %140, %141 : vector<2x32xf32>
    %143 = math.tanh %142 : vector<2x32xf32>
    %144 = arith.mulf %139, %143 : vector<2x32xf32>
    %c0_40 = arith.constant 0 : index
    %c3_41 = arith.constant 3 : index
    %c0_42 = arith.constant 0 : index
    %145 = vector.load %arg6[%c0_40, %c3_41, %c0_42] : memref<2x7x32xf32, #tpu.memory_space<vmem>>, vector<2x1x32xf32>
    %146 = vector.shape_cast %145 : vector<2x1x32xf32> to vector<2x32xf32>
    %147 = vector.shape_cast %144 : vector<2x32xf32> to vector<2x1x32xf32>
    tpu.vector_store %arg6[%c0_40, %c3_41, %c0_42], %147 {strides = array<i32>} : memref<2x7x32xf32, #tpu.memory_space<vmem>>, vector<2x1x32xf32>,
    %c0_43 = arith.constant 0 : index
    %c4 = arith.constant 4 : index
    %c0_44 = arith.constant 0 : index
    %148 = vector.load %arg1[%c0_43, %c4, %c0_44] : memref<2x7x32xf32, #tpu.memory_space<vmem>>, vector<2x1x32xf32>
    %149 = vector.shape_cast %148 : vector<2x1x32xf32> to vector<2x32xf32>
    %150 = arith.truncf %149 : vector<2x32xf32> to vector<2x32xbf16>
    %151 = arith.truncf %144 : vector<2x32xf32> to vector<2x32xbf16>
    %152 = tpu.concatenate %150, %151 in 1 : vector<2x32xbf16>, vector<2x32xbf16> -> vector<2x64xbf16>
    %cst_45 = arith.constant dense<0.000000e+00> : vector<2x128xf32>
    %153 = tpu.matmul %152, %0, %cst_45 {dimension_numbers = #tpu.dot_dimension_numbers<[1], [0], [0], [1], [0, 0, 1, 1], [], []>} : vector<2x64xbf16>, vector<64x128xbf16>, vector<2x128xf32> -> vector<2x128xf32>
    %154 = vector.broadcast %1 : vector<1x128xf32> to vector<2x128xf32>
    %155 = arith.addf %153, %154 : vector<2x128xf32>
    %156 = vector.extract_strided_slice %155 {offsets = [0, 0], sizes = [2, 32], strides = [1, 1]} : vector<2x128xf32> to vector<2x32xf32>
    %157 = arith.negf %156 : vector<2x32xf32>
    %158 = math.exp %157 : vector<2x32xf32>
    %cst_46 = arith.constant 1.000000e+00 : f32
    %159 = vector.broadcast %cst_46 : f32 to vector<2x32xf32>
    %160 = arith.addf %159, %158 : vector<2x32xf32>
    %161 = arith.divf %159, %160 : vector<2x32xf32>
    %162 = vector.extract_strided_slice %155 {offsets = [0, 32], sizes = [2, 32], strides = [1, 1]} : vector<2x128xf32> to vector<2x32xf32>
    %163 = arith.negf %162 : vector<2x32xf32>
    %164 = math.exp %163 : vector<2x32xf32>
    %cst_47 = arith.constant 1.000000e+00 : f32
    %165 = vector.broadcast %cst_47 : f32 to vector<2x32xf32>
    %166 = arith.addf %165, %164 : vector<2x32xf32>
    %167 = arith.divf %165, %166 : vector<2x32xf32>
    %168 = vector.extract_strided_slice %155 {offsets = [0, 64], sizes = [2, 32], strides = [1, 1]} : vector<2x128xf32> to vector<2x32xf32>
    %169 = math.tanh %168 : vector<2x32xf32>
    %170 = vector.extract_strided_slice %155 {offsets = [0, 96], sizes = [2, 32], strides = [1, 1]} : vector<2x128xf32> to vector<2x32xf32>
    %171 = arith.negf %170 : vector<2x32xf32>
    %172 = math.exp %171 : vector<2x32xf32>
    %cst_48 = arith.constant 1.000000e+00 : f32
    %173 = vector.broadcast %cst_48 : f32 to vector<2x32xf32>
    %174 = arith.addf %173, %172 : vector<2x32xf32>
    %175 = arith.divf %173, %174 : vector<2x32xf32>
    %176 = arith.mulf %167, %142 : vector<2x32xf32>
    %177 = arith.mulf %161, %169 : vector<2x32xf32>
    %178 = arith.addf %176, %177 : vector<2x32xf32>
    %179 = math.tanh %178 : vector<2x32xf32>
    %180 = arith.mulf %175, %179 : vector<2x32xf32>
    %c0_49 = arith.constant 0 : index
    %c4_50 = arith.constant 4 : index
    %c0_51 = arith.constant 0 : index
    %181 = vector.load %arg6[%c0_49, %c4_50, %c0_51] : memref<2x7x32xf32, #tpu.memory_space<vmem>>, vector<2x1x32xf32>
    %182 = vector.shape_cast %181 : vector<2x1x32xf32> to vector<2x32xf32>
    %183 = vector.shape_cast %180 : vector<2x32xf32> to vector<2x1x32xf32>
    tpu.vector_store %arg6[%c0_49, %c4_50, %c0_51], %183 {strides = array<i32>} : memref<2x7x32xf32, #tpu.memory_space<vmem>>, vector<2x1x32xf32>,
    %c0_52 = arith.constant 0 : index
    %c5 = arith.constant 5 : index
    %c0_53 = arith.constant 0 : index
    %184 = vector.load %arg1[%c0_52, %c5, %c0_53] : memref<2x7x32xf32, #tpu.memory_space<vmem>>, vector<2x1x32xf32>
    %185 = vector.shape_cast %184 : vector<2x1x32xf32> to vector<2x32xf32>
    %186 = arith.truncf %185 : vector<2x32xf32> to vector<2x32xbf16>
    %187 = arith.truncf %180 : vector<2x32xf32> to vector<2x32xbf16>
    %188 = tpu.concatenate %186, %187 in 1 : vector<2x32xbf16>, vector<2x32xbf16> -> vector<2x64xbf16>
    %cst_54 = arith.constant dense<0.000000e+00> : vector<2x128xf32>
    %189 = tpu.matmul %188, %0, %cst_54 {dimension_numbers = #tpu.dot_dimension_numbers<[1], [0], [0], [1], [0, 0, 1, 1], [], []>} : vector<2x64xbf16>, vector<64x128xbf16>, vector<2x128xf32> -> vector<2x128xf32>
    %190 = vector.broadcast %1 : vector<1x128xf32> to vector<2x128xf32>
    %191 = arith.addf %189, %190 : vector<2x128xf32>
    %192 = vector.extract_strided_slice %191 {offsets = [0, 0], sizes = [2, 32], strides = [1, 1]} : vector<2x128xf32> to vector<2x32xf32>
    %193 = arith.negf %192 : vector<2x32xf32>
    %194 = math.exp %193 : vector<2x32xf32>
    %cst_55 = arith.constant 1.000000e+00 : f32
    %195 = vector.broadcast %cst_55 : f32 to vector<2x32xf32>
    %196 = arith.addf %195, %194 : vector<2x32xf32>
    %197 = arith.divf %195, %196 : vector<2x32xf32>
    %198 = vector.extract_strided_slice %191 {offsets = [0, 32], sizes = [2, 32], strides = [1, 1]} : vector<2x128xf32> to vector<2x32xf32>
    %199 = arith.negf %198 : vector<2x32xf32>
    %200 = math.exp %199 : vector<2x32xf32>
    %cst_56 = arith.constant 1.000000e+00 : f32
    %201 = vector.broadcast %cst_56 : f32 to vector<2x32xf32>
    %202 = arith.addf %201, %200 : vector<2x32xf32>
    %203 = arith.divf %201, %202 : vector<2x32xf32>
    %204 = vector.extract_strided_slice %191 {offsets = [0, 64], sizes = [2, 32], strides = [1, 1]} : vector<2x128xf32> to vector<2x32xf32>
    %205 = math.tanh %204 : vector<2x32xf32>
    %206 = vector.extract_strided_slice %191 {offsets = [0, 96], sizes = [2, 32], strides = [1, 1]} : vector<2x128xf32> to vector<2x32xf32>
    %207 = arith.negf %206 : vector<2x32xf32>
    %208 = math.exp %207 : vector<2x32xf32>
    %cst_57 = arith.constant 1.000000e+00 : f32
    %209 = vector.broadcast %cst_57 : f32 to vector<2x32xf32>
    %210 = arith.addf %209, %208 : vector<2x32xf32>
    %211 = arith.divf %209, %210 : vector<2x32xf32>
    %212 = arith.mulf %203, %178 : vector<2x32xf32>
    %213 = arith.mulf %197, %205 : vector<2x32xf32>
    %214 = arith.addf %212, %213 : vector<2x32xf32>
    %215 = math.tanh %214 : vector<2x32xf32>
    %216 = arith.mulf %211, %215 : vector<2x32xf32>
    %c0_58 = arith.constant 0 : index
    %c5_59 = arith.constant 5 : index
    %c0_60 = arith.constant 0 : index
    %217 = vector.load %arg6[%c0_58, %c5_59, %c0_60] : memref<2x7x32xf32, #tpu.memory_space<vmem>>, vector<2x1x32xf32>
    %218 = vector.shape_cast %217 : vector<2x1x32xf32> to vector<2x32xf32>
    %219 = vector.shape_cast %216 : vector<2x32xf32> to vector<2x1x32xf32>
    tpu.vector_store %arg6[%c0_58, %c5_59, %c0_60], %219 {strides = array<i32>} : memref<2x7x32xf32, #tpu.memory_space<vmem>>, vector<2x1x32xf32>,
    %c0_61 = arith.constant 0 : index
    %c6 = arith.constant 6 : index
    %c0_62 = arith.constant 0 : index
    %220 = vector.load %arg1[%c0_61, %c6, %c0_62] : memref<2x7x32xf32, #tpu.memory_space<vmem>>, vector<2x1x32xf32>
    %221 = vector.shape_cast %220 : vector<2x1x32xf32> to vector<2x32xf32>
    %222 = arith.truncf %221 : vector<2x32xf32> to vector<2x32xbf16>
    %223 = arith.truncf %216 : vector<2x32xf32> to vector<2x32xbf16>
    %224 = tpu.concatenate %222, %223 in 1 : vector<2x32xbf16>, vector<2x32xbf16> -> vector<2x64xbf16>
    %cst_63 = arith.constant dense<0.000000e+00> : vector<2x128xf32>
    %225 = tpu.matmul %224, %0, %cst_63 {dimension_numbers = #tpu.dot_dimension_numbers<[1], [0], [0], [1], [0, 0, 1, 1], [], []>} : vector<2x64xbf16>, vector<64x128xbf16>, vector<2x128xf32> -> vector<2x128xf32>
    %226 = vector.broadcast %1 : vector<1x128xf32> to vector<2x128xf32>
    %227 = arith.addf %225, %226 : vector<2x128xf32>
    %228 = vector.extract_strided_slice %227 {offsets = [0, 0], sizes = [2, 32], strides = [1, 1]} : vector<2x128xf32> to vector<2x32xf32>
    %229 = arith.negf %228 : vector<2x32xf32>
    %230 = math.exp %229 : vector<2x32xf32>
    %cst_64 = arith.constant 1.000000e+00 : f32
    %231 = vector.broadcast %cst_64 : f32 to vector<2x32xf32>
    %232 = arith.addf %231, %230 : vector<2x32xf32>
    %233 = arith.divf %231, %232 : vector<2x32xf32>
    %234 = vector.extract_strided_slice %227 {offsets = [0, 32], sizes = [2, 32], strides = [1, 1]} : vector<2x128xf32> to vector<2x32xf32>
    %235 = arith.negf %234 : vector<2x32xf32>
    %236 = math.exp %235 : vector<2x32xf32>
    %cst_65 = arith.constant 1.000000e+00 : f32
    %237 = vector.broadcast %cst_65 : f32 to vector<2x32xf32>
    %238 = arith.addf %237, %236 : vector<2x32xf32>
    %239 = arith.divf %237, %238 : vector<2x32xf32>
    %240 = vector.extract_strided_slice %227 {offsets = [0, 64], sizes = [2, 32], strides = [1, 1]} : vector<2x128xf32> to vector<2x32xf32>
    %241 = math.tanh %240 : vector<2x32xf32>
    %242 = vector.extract_strided_slice %227 {offsets = [0, 96], sizes = [2, 32], strides = [1, 1]} : vector<2x128xf32> to vector<2x32xf32>
    %243 = arith.negf %242 : vector<2x32xf32>
    %244 = math.exp %243 : vector<2x32xf32>
    %cst_66 = arith.constant 1.000000e+00 : f32
    %245 = vector.broadcast %cst_66 : f32 to vector<2x32xf32>
    %246 = arith.addf %245, %244 : vector<2x32xf32>
    %247 = arith.divf %245, %246 : vector<2x32xf32>
    %248 = arith.mulf %239, %214 : vector<2x32xf32>
    %249 = arith.mulf %233, %241 : vector<2x32xf32>
    %250 = arith.addf %248, %249 : vector<2x32xf32>
    %251 = math.tanh %250 : vector<2x32xf32>
    %252 = arith.mulf %247, %251 : vector<2x32xf32>
    %c0_67 = arith.constant 0 : index
    %c6_68 = arith.constant 6 : index
    %c0_69 = arith.constant 0 : index
    %253 = vector.load %arg6[%c0_67, %c6_68, %c0_69] : memref<2x7x32xf32, #tpu.memory_space<vmem>>, vector<2x1x32xf32>
    %254 = vector.shape_cast %253 : vector<2x1x32xf32> to vector<2x32xf32>
    %255 = vector.shape_cast %252 : vector<2x32xf32> to vector<2x1x32xf32>
    tpu.vector_store %arg6[%c0_67, %c6_68, %c0_69], %255 {strides = array<i32>} : memref<2x7x32xf32, #tpu.memory_space<vmem>>, vector<2x1x32xf32>,
    %c0_70 = arith.constant 0 : index
    %c0_71 = arith.constant 0 : index
    %256 = vector.load %arg7[%c0_70, %c0_71] : memref<2x32xf32, #tpu.memory_space<vmem>>, vector<2x32xf32>
    tpu.vector_store %arg7[%c0_70, %c0_71], %252 {strides = array<i32>} : memref<2x32xf32, #tpu.memory_space<vmem>>, vector<2x32xf32>,
    %c0_72 = arith.constant 0 : index
    %c0_73 = arith.constant 0 : index
    %257 = vector.load %arg8[%c0_72, %c0_73] : memref<2x32xf32, #tpu.memory_space<vmem>>, vector<2x32xf32>
    tpu.vector_store %arg8[%c0_72, %c0_73], %250 {strides = array<i32>} : memref<2x32xf32, #tpu.memory_space<vmem>>, vector<2x32xf32>,
    return
  }
  func.func @transform_0(%arg0: i32) -> (i32, i32, i32) {
    %c0_i32 = arith.constant 0 : i32
    %c0_i32_0 = arith.constant 0 : i32
    %c0_i32_1 = arith.constant 0 : i32
    %c0_i32_2 = arith.constant 0 : i32
    return %c0_i32, %c0_i32_0, %c0_i32_1 : i32, i32, i32
  }
  func.func @transform_1(%arg0: i32) -> (i32, i32) {
    %c0_i32 = arith.constant 0 : i32
    %c0_i32_0 = arith.constant 0 : i32
    %c0_i32_1 = arith.constant 0 : i32
    return %c0_i32, %c0_i32_0 : i32, i32
  }
  func.func @transform_2(%arg0: i32) -> (i32, i32) {
    %c0_i32 = arith.constant 0 : i32
    %c0_i32_0 = arith.constant 0 : i32
    %c0_i32_1 = arith.constant 0 : i32
    return %c0_i32, %c0_i32_0 : i32, i32
  }
  func.func @transform_3(%arg0: i32) -> (i32, i32) {
    %c0_i32 = arith.constant 0 : i32
    %c0_i32_0 = arith.constant 0 : i32
    %c0_i32_1 = arith.constant 0 : i32
    return %c0_i32, %c0_i32_0 : i32, i32
  }
  func.func @transform_4(%arg0: i32) -> (i32, i32) {
    %c0_i32 = arith.constant 0 : i32
    %c0_i32_0 = arith.constant 0 : i32
    %c0_i32_1 = arith.constant 0 : i32
    return %c0_i32, %c0_i32_0 : i32, i32
  }
  func.func @transform_5(%arg0: i32) -> (i32, i32, i32) {
    %c0_i32 = arith.constant 0 : i32
    %c0_i32_0 = arith.constant 0 : i32
    %c0_i32_1 = arith.constant 0 : i32
    %c0_i32_2 = arith.constant 0 : i32
    return %c0_i32, %c0_i32_0, %c0_i32_1 : i32, i32, i32
  }
  func.func @transform_6(%arg0: i32) -> (i32, i32) {
    %c0_i32 = arith.constant 0 : i32
    %c0_i32_0 = arith.constant 0 : i32
    %c0_i32_1 = arith.constant 0 : i32
    return %c0_i32, %c0_i32_0 : i32, i32
  }
  func.func @transform_7(%arg0: i32) -> (i32, i32) {
    %c0_i32 = arith.constant 0 : i32
    %c0_i32_0 = arith.constant 0 : i32
    %c0_i32_1 = arith.constant 0 : i32
    return %c0_i32, %c0_i32_0 : i32, i32
  }
}

</mosaic_0001>

<llo_original>
// kernel: tpu_custom_call.1
$region0: #{tpu_custom_call.1}
  #allocation0 [shape = 'u32[]', space=smem, size = 0x4, offset = 0x4, fixed_abs, tag = 'smem constant byte address 0x4 - core index']
  #allocation1 [shape = 'u32[72,128]{1,0:T(1,128)}', space=vmem, size = 0x9000, scoped, tag = 'internal scratch']
  %s0 = inlined_call_operand.vmem [shape: f32[2,7,32], index: 0, kind: input, shape index: {}]
  %s1 = inlined_call_operand.hbm [shape: bf16[64,128], index: 1, kind: input, shape index: {}]
  %s2 = inlined_call_operand.vmem [shape: f32[1,128], index: 2, kind: input, shape index: {}]
  %s3 = inlined_call_operand.vmem [shape: f32[2,32], index: 3, kind: input, shape index: {}]
  %s4 = inlined_call_operand.vmem [shape: f32[2,32], index: 4, kind: input, shape index: {}]
  %s5 = inlined_call_operand.vmem [shape: f32[2,7,32], index: 5, kind: output, shape index: {0}]
  %s6 = inlined_call_operand.hbm [shape: f32[2,32], index: 6, kind: output, shape index: {1}]
  %s7 = inlined_call_operand.hbm [shape: f32[2,32], index: 7, kind: output, shape index: {2}]
  %8 = xla_tuple %s5, %s6, %s7
  %s9 = sld [smem:[#allocation0]]
  $region50: #{tpu_custom_call.1} parent=0
    _
  %s11 = ssub.s32 1, %s9
  %s12 = scalar_select 0, %s11, %s9
  $region1: #{tpu_custom_call.1} parent=0
    #allocation2 [shape = 'u8[16384]{0}', space=vmem, size = 0x4000, scoped, tag = 'input window, operand 1, single buffered']
    #allocation3 [shape = 's32[1]{0}', space=sflag, size = 0x4, scoped, tag = 'scoped memory for tpu_custom_call.1']
    #allocation4 [shape = 's32[1]{0}', space=sflag, size = 0x4, scoped, tag = 'scoped memory for tpu_custom_call.1']
    #allocation5 [shape = 'u8[1024]{0}', space=vmem, size = 0x400, scoped, tag = 'output window, operand 1, single buffered']
    #allocation6 [shape = 'u8[1024]{0}', space=vmem, size = 0x400, scoped, tag = 'output window, operand 2, single buffered']
    #allocation7 [shape = 's32[1]{0}', space=sflag, size = 0x4, scoped, tag = 'scoped memory for tpu_custom_call.1']
    %13 = vsyncpa [#allocation3], 0
    %14 = vsyncpa [#allocation4], 0
    %15 = vsyncpa [#allocation7], 0
    // Predicated region
    $region2: #{tpu_custom_call.1} parent=1 // pred_check
      _
    $region3: #{tpu_custom_call.1} parent=1 // pred_check_branch
      %17 = sbr.rel (0) target = $region5
    $region4: #{tpu_custom_call.1} parent=1 // pred_region
      _
    $region5: #{tpu_custom_call.1} parent=1 // pred_fallthru
      _
    // Predicated region
    $region6: #{tpu_custom_call.1} parent=1 // pred_check
      _
    $region7: #{tpu_custom_call.1} parent=1 // pred_check_branch
      %19 = sbr.rel (0) target = $region9
    $region8: #{tpu_custom_call.1} parent=1 // pred_region
      %21 = vsyncadd [#allocation3], 0
      %s22 = sshll.u32 %s1, 4
      %s23 = int_to_ptr.hbm [resolvable:$true] %s22
      %s24 = sshll.u32 [#allocation2], 4
      %s25 = int_to_ptr.vmem [resolvable:$true] %s24
      %30 = dma.hbm_to_vmem [thread:$0]  %s23, 512, %s25, [#allocation3], 64, 64, 4
    $region9: #{tpu_custom_call.1} parent=1 // pred_fallthru
      _
    // Predicated region
    $region10: #{tpu_custom_call.1} parent=1 // pred_check
      _
    $region11: #{tpu_custom_call.1} parent=1 // pred_check_branch
      %32 = sbr.rel (0) target = $region13
    $region12: #{tpu_custom_call.1} parent=1 // pred_region
      _
    $region13: #{tpu_custom_call.1} parent=1 // pred_fallthru
      _
    // Predicated region
    $region14: #{tpu_custom_call.1} parent=1 // pred_check
      _
    $region15: #{tpu_custom_call.1} parent=1 // pred_check_branch
      %34 = sbr.rel (0) target = $region17
    $region16: #{tpu_custom_call.1} parent=1 // pred_region
      _
    $region17: #{tpu_custom_call.1} parent=1 // pred_fallthru
      _
    // Predicated region
    $region18: #{tpu_custom_call.1} parent=1 // pred_check
      _
    $region19: #{tpu_custom_call.1} parent=1 // pred_check_branch
      %36 = sbr.rel (0) target = $region21
    $region20: #{tpu_custom_call.1} parent=1 // pred_region
      _
    $region21: #{tpu_custom_call.1} parent=1 // pred_fallthru
      _
    // Predicated region
    $region22: #{tpu_custom_call.1} parent=1 // pred_check
      _
    $region23: #{tpu_custom_call.1} parent=1 // pred_check_branch
      %38 = sbr.rel (0) target = $region25
    $region24: #{tpu_custom_call.1} parent=1 // pred_region
      %40 = dma.done [#allocation3], 512
    $region25: #{tpu_custom_call.1} parent=1 // pred_fallthru
      _
    %v42 = vld [vmem:[#allocation2] sm:$0xf]
    %v43 = vld [vmem:[#allocation2 + $0x4] sm:$0xf]
    %v44 = vld [vmem:[#allocation2 + $0x8] sm:$0xf]
    %v45 = vld [vmem:[#allocation2 + $0xc] sm:$0xf]
    %v46 = vld [vmem:[#allocation2 + $0x10] sm:$0xf]
    %v47 = vld [vmem:[#allocation2 + $0x14] sm:$0xf]
    %v48 = vld [vmem:[#allocation2 + $0x18] sm:$0xf]
    %v49 = vld [vmem:[#allocation2 + $0x1c] sm:$0xf]
    %v50 = vld [vmem:[%s2] sm:$0x1]
    %v51 = vld [vmem:[%s3] sm:$0x3]
    %v52 = vld [vmem:[%s4] sm:$0x3]
    %v53 = vld [vmem:[%s0] sm:$0x1]
    %v54 = vld [vmem:[%s0 + $0x8] sm:$0x1]
    %v55 = vpack.c.bf16 %v53, %v53
    %v56 = vpack.c.bf16 %v54, %v54
    %v57 = vpack.c.bf16 %v51, %v51
    %v60 = vunpack.c.l.b16 %v55
    %v61 = vunpack.c.l.b16 %v56
    %v62 = vpack.c.b16 %v60, %v60
    %v63 = vpack.c.b16 %v61, %v61
    %v64 = vunpack.c.l.b16 %v62
    %v65 = vunpack.c.l.b16 %v63
    %v66 = vrot.slane %v65, 7
    %vm67 = vcmask 1041409
    %v68 = vsel %vm67, %v66, %v64
    %v69 = vpack.c.b16 %v68, %v68
    %v71 = vunpack.c.l.b16 %v57
    %v72 = vpack.c.b16 %v71, %v71
    %73 = vrot.lane.b32.xlu0 %v72, 32
    %v74 = vpop.permute.xlu0 %73
    %vm75 = vcmask 261120
    %v78 = vsel %vm75, %v69, %v74
    %v80 = vperm.slane %v50, 0
    %v90 = vunpack.c.l.b16 %v42
    %v91 = vunpack.c.l.b16 %v43
    %v92 = vunpack.c.l.b16 %v44
    %v93 = vunpack.c.l.b16 %v45
    %v94 = vunpack.c.l.b16 %v46
    %v95 = vunpack.c.l.b16 %v47
    %v96 = vunpack.c.l.b16 %v48
    %v97 = vunpack.c.l.b16 %v49
    %v98 = vpack.c.b16 %v91, %v90
    %v99 = vpack.c.b16 %v93, %v92
    %v100 = vpack.c.b16 %v95, %v94
    %v101 = vpack.c.b16 %v97, %v96
    %vm106 = vcmask 523264
    %v107 = vsel %vm106, %v78, 0
    %109 = vmatpush.bf16.msra.mxu0 0
    %110 = vmatpush.bf16.msra.mxu0 0
    %111 = vmatpush.bf16.msra.mxu0 0
    %112 = vmatpush.bf16.msra.mxu0 0
    %113 = vmatpush.bf16.msra.mxu0 %v101
    %114 = vmatpush.bf16.msra.mxu0 %v100
    %115 = vmatpush.bf16.msra.mxu0 %v99
    %116 = vmatpush.bf16.msra.mxu0 %v98
    %117 = vmatmul.bf16.gmra.mxu0 %v107
    %v118 = vpop.f32.mrf.mxu0
    %v119 = vadd.f32 %v80, %v118
    %v120 = vpop.f32.mrf.mxu0
    %121 = vdwg.mxu0
    %v122 = vxor.u32 %v119, 2147483648
    %v123 = vmul.f32 %v122, 1.442695
    %v124 = vpow.pop %v123
    %v125 = vadd.f32 %v124, 1.0
    %v126 = vrcp.pop %v125
    %v127 = vmul.f32 %v125, %v126
    %v128 = vsub.f32 1.0, %v127
    %v129 = vmul.f32 %v126, %v128
    %v130 = vadd.f32 %v126, %v129
    %vm131 = vweird.f32 %v125
    %vm132 = vweird.f32 %v126
    %vm133 = vmor %vm131, %vm132
    %v134 = vsel %vm133, %v126, %v130
    %v135 = vand.u32 2147483647, %v125
    %vm136 = vcmp.eq.f32.partialorder %v135, 8.507059e+37
    %v137 = vand.u32 %v125, 2147483648
    %v138 = vor.u32 1.1754944e-38, %v137
    %v139 = vsel %vm136, %v138, %v134
    %v140 = vmul.f32 1.0, %v139
    %v141 = vtanh.pop %v119
    %143 = vrot.lane.b32.xlu0 %v52, 32
    %v144 = vpop.permute.xlu0 %143
    %v146 = vmul.f32 %v140, %v144
    %148 = vrot.lane.b32.xlu0 %v141, 64
    %v149 = vpop.permute.xlu0 %148
    %v151 = vmul.f32 %v140, %v149
    %153 = vrot.lane.b32.xlu0 %v151, 32
    %v154 = vpop.permute.xlu0 %153
    %v156 = vadd.f32 %v146, %v154
    %v157 = vtanh.pop %v156
    %159 = vrot.lane.b32.xlu0 %v157, 64
    %v160 = vpop.permute.xlu0 %159
    %v162 = vmul.f32 %v140, %v160
    %v164 = vrot.slane %v162, 1
    %v165 = vperm.slane %v162, 0
    %v166 = vperm.slane %v164, 0
    %167 = vrot.lane.b32.xlu0 %v165, 32
    %v168 = vpop.permute.xlu0 %167
    %169 = vrot.lane.b32.xlu0 %v166, 32
    %v170 = vpop.permute.xlu0 %169
    %vm173 = vcmask 253952
    %174 = vst.msk [vmem:[%s5] sm:$0x1] %vm173, %v168
    %175 = vst.msk [vmem:[%s5 + $0x8] sm:$0x1] %vm173, %v170
    %v176 = vld [vmem:[%s0 + $0x1] sm:$0x1]
    %v177 = vld [vmem:[%s0 + $0x9] sm:$0x1]
    %v178 = vpack.c.bf16 %v176, %v176
    %v179 = vpack.c.bf16 %v177, %v177
    %v180 = vpack.c.bf16 %v162, %v162
    %v183 = vunpack.c.l.b16 %v178
    %v184 = vunpack.c.l.b16 %v179
    %v185 = vpack.c.b16 %v183, %v183
    %v186 = vpack.c.b16 %v184, %v184
    %v187 = vunpack.c.l.b16 %v185
    %v188 = vunpack.c.l.b16 %v186
    %v189 = vrot.slane %v188, 7
    %v190 = vsel %vm67, %v189, %v187
    %v191 = vpack.c.b16 %v190, %v190
    %v193 = vunpack.c.l.b16 %v180
    %v194 = vpack.c.b16 %v193, %v193
    %195 = vrot.lane.b32.xlu0 %v194, 64
    %v196 = vpop.permute.xlu0 %195
    %v199 = vsel %vm75, %v191, %v196
    %v200 = vsel %vm106, %v199, 0
    %202 = vmatpush.bf16.msra.mxu0 0
    %203 = vmatpush.bf16.msra.mxu0 0
    %204 = vmatpush.bf16.msra.mxu0 0
    %205 = vmatpush.bf16.msra.mxu0 0
    %206 = vmatpush.bf16.msra.mxu0 %v101
    %207 = vmatpush.bf16.msra.mxu0 %v100
    %208 = vmatpush.bf16.msra.mxu0 %v99
    %209 = vmatpush.bf16.msra.mxu0 %v98
    %210 = vmatmul.bf16.gmra.mxu0 %v200
    %v211 = vpop.f32.mrf.mxu0
    %v212 = vadd.f32 %v80, %v211
    %v213 = vpop.f32.mrf.mxu0
    %214 = vdwg.mxu0
    %v215 = vxor.u32 %v212, 2147483648
    %v216 = vmul.f32 %v215, 1.442695
    %v217 = vpow.pop %v216
    %v218 = vadd.f32 %v217, 1.0
    %v219 = vrcp.pop %v218
    %v220 = vmul.f32 %v218, %v219
    %v221 = vsub.f32 1.0, %v220
    %v222 = vmul.f32 %v219, %v221
    %v223 = vadd.f32 %v219, %v222
    %vm224 = vweird.f32 %v218
    %vm225 = vweird.f32 %v219
    %vm226 = vmor %vm224, %vm225
    %v227 = vsel %vm226, %v219, %v223
    %v228 = vand.u32 2147483647, %v218
    %vm229 = vcmp.eq.f32.partialorder %v228, 8.507059e+37
    %v230 = vand.u32 %v218, 2147483648
    %v231 = vor.u32 1.1754944e-38, %v230
    %v232 = vsel %vm229, %v231, %v227
    %v233 = vmul.f32 1.0, %v232
    %v234 = vtanh.pop %v212
    %v235 = vmul.f32 %v233, %v156
    %237 = vrot.lane.b32.xlu0 %v234, 64
    %v238 = vpop.permute.xlu0 %237
    %v240 = vmul.f32 %v233, %v238
    %242 = vrot.lane.b32.xlu0 %v240, 32
    %v243 = vpop.permute.xlu0 %242
    %v245 = vadd.f32 %v235, %v243
    %v246 = vtanh.pop %v245
    %248 = vrot.lane.b32.xlu0 %v246, 64
    %v249 = vpop.permute.xlu0 %248
    %v251 = vmul.f32 %v233, %v249
    %v253 = vrot.slane %v251, 1
    %v254 = vperm.slane %v251, 0
    %v255 = vperm.slane %v253, 0
    %256 = vrot.lane.b32.xlu0 %v254, 32
    %v257 = vpop.permute.xlu0 %256
    %258 = vrot.lane.b32.xlu0 %v255, 32
    %v259 = vpop.permute.xlu0 %258
    %262 = vst.msk [vmem:[%s5 + $0x1] sm:$0x1] %vm173, %v257
    %263 = vst.msk [vmem:[%s5 + $0x9] sm:$0x1] %vm173, %v259
    %v264 = vld [vmem:[%s0 + $0x2] sm:$0x1]
    %v265 = vld [vmem:[%s0 + $0xa] sm:$0x1]
    %v266 = vpack.c.bf16 %v264, %v264
    %v267 = vpack.c.bf16 %v265, %v265
    %v268 = vpack.c.bf16 %v251, %v251
    %v271 = vunpack.c.l.b16 %v266
    %v272 = vunpack.c.l.b16 %v267
    %v273 = vpack.c.b16 %v271, %v271
    %v274 = vpack.c.b16 %v272, %v272
    %v275 = vunpack.c.l.b16 %v273
    %v276 = vunpack.c.l.b16 %v274
    %v277 = vrot.slane %v276, 7
    %v278 = vsel %vm67, %v277, %v275
    %v279 = vpack.c.b16 %v278, %v278
    %v281 = vunpack.c.l.b16 %v268
    %v282 = vpack.c.b16 %v281, %v281
    %283 = vrot.lane.b32.xlu0 %v282, 64
    %v284 = vpop.permute.xlu0 %283
    %v287 = vsel %vm75, %v279, %v284
    %v288 = vsel %vm106, %v287, 0
    %290 = vmatpush.bf16.msra.mxu0 0
    %291 = vmatpush.bf16.msra.mxu0 0
    %292 = vmatpush.bf16.msra.mxu0 0
    %293 = vmatpush.bf16.msra.mxu0 0
    %294 = vmatpush.bf16.msra.mxu0 %v101
    %295 = vmatpush.bf16.msra.mxu0 %v100
    %296 = vmatpush.bf16.msra.mxu0 %v99
    %297 = vmatpush.bf16.msra.mxu0 %v98
    %298 = vmatmul.bf16.gmra.mxu0 %v288
    %v299 = vpop.f32.mrf.mxu0
    %v300 = vadd.f32 %v80, %v299
    %v301 = vpop.f32.mrf.mxu0
    %302 = vdwg.mxu0
    %v303 = vxor.u32 %v300, 2147483648
    %v304 = vmul.f32 %v303, 1.442695
    %v305 = vpow.pop %v304
    %v306 = vadd.f32 %v305, 1.0
    %v307 = vrcp.pop %v306
    %v308 = vmul.f32 %v306, %v307
    %v309 = vsub.f32 1.0, %v308
    %v310 = vmul.f32 %v307, %v309
    %v311 = vadd.f32 %v307, %v310
    %vm312 = vweird.f32 %v306
    %vm313 = vweird.f32 %v307
    %vm314 = vmor %vm312, %vm313
    %v315 = vsel %vm314, %v307, %v311
    %v316 = vand.u32 2147483647, %v306
    %vm317 = vcmp.eq.f32.partialorder %v316, 8.507059e+37
    %v318 = vand.u32 %v306, 2147483648
    %v319 = vor.u32 1.1754944e-38, %v318
    %v320 = vsel %vm317, %v319, %v315
    %v321 = vmul.f32 1.0, %v320
    %v322 = vtanh.pop %v300
    %v323 = vmul.f32 %v321, %v245
    %325 = vrot.lane.b32.xlu0 %v322, 64
    %v326 = vpop.permute.xlu0 %325
    %v328 = vmul.f32 %v321, %v326
    %330 = vrot.lane.b32.xlu0 %v328, 32
    %v331 = vpop.permute.xlu0 %330
    %v333 = vadd.f32 %v323, %v331
    %v334 = vtanh.pop %v333
    %336 = vrot.lane.b32.xlu0 %v334, 64
    %v337 = vpop.permute.xlu0 %336
    %v339 = vmul.f32 %v321, %v337
    %v341 = vrot.slane %v339, 1
    %v342 = vperm.slane %v339, 0
    %v343 = vperm.slane %v341, 0
    %344 = vrot.lane.b32.xlu0 %v342, 32
    %v345 = vpop.permute.xlu0 %344
    %346 = vrot.lane.b32.xlu0 %v343, 32
    %v347 = vpop.permute.xlu0 %346
    %350 = vst.msk [vmem:[%s5 + $0x2] sm:$0x1] %vm173, %v345
    %351 = vst.msk [vmem:[%s5 + $0xa] sm:$0x1] %vm173, %v347
    %v352 = vld [vmem:[%s0 + $0x3] sm:$0x1]
    %v353 = vld [vmem:[%s0 + $0xb] sm:$0x1]
    %v354 = vpack.c.bf16 %v352, %v352
    %v355 = vpack.c.bf16 %v353, %v353
    %v356 = vpack.c.bf16 %v339, %v339
    %v359 = vunpack.c.l.b16 %v354
    %v360 = vunpack.c.l.b16 %v355
    %v361 = vpack.c.b16 %v359, %v359
    %v362 = vpack.c.b16 %v360, %v360
    %v363 = vunpack.c.l.b16 %v361
    %v364 = vunpack.c.l.b16 %v362
    %v365 = vrot.slane %v364, 7
    %v366 = vsel %vm67, %v365, %v363
    %v367 = vpack.c.b16 %v366, %v366
    %v369 = vunpack.c.l.b16 %v356
    %v370 = vpack.c.b16 %v369, %v369
    %371 = vrot.lane.b32.xlu0 %v370, 64
    %v372 = vpop.permute.xlu0 %371
    %v375 = vsel %vm75, %v367, %v372
    %v376 = vsel %vm106, %v375, 0
    %378 = vmatpush.bf16.msra.mxu0 0
    %379 = vmatpush.bf16.msra.mxu0 0
    %380 = vmatpush.bf16.msra.mxu0 0
    %381 = vmatpush.bf16.msra.mxu0 0
    %382 = vmatpush.bf16.msra.mxu0 %v101
    %383 = vmatpush.bf16.msra.mxu0 %v100
    %384 = vmatpush.bf16.msra.mxu0 %v99
    %385 = vmatpush.bf16.msra.mxu0 %v98
    %386 = vmatmul.bf16.gmra.mxu0 %v376
    %v387 = vpop.f32.mrf.mxu0
    %v388 = vadd.f32 %v80, %v387
    %v389 = vpop.f32.mrf.mxu0
    %390 = vdwg.mxu0
    %v391 = vxor.u32 %v388, 2147483648
    %v392 = vmul.f32 %v391, 1.442695
    %v393 = vpow.pop %v392
    %v394 = vadd.f32 %v393, 1.0
    %v395 = vrcp.pop %v394
    %v396 = vmul.f32 %v394, %v395
    %v397 = vsub.f32 1.0, %v396
    %v398 = vmul.f32 %v395, %v397
    %v399 = vadd.f32 %v395, %v398
    %vm400 = vweird.f32 %v394
    %vm401 = vweird.f32 %v395
    %vm402 = vmor %vm400, %vm401
    %v403 = vsel %vm402, %v395, %v399
    %v404 = vand.u32 2147483647, %v394
    %vm405 = vcmp.eq.f32.partialorder %v404, 8.507059e+37
    %v406 = vand.u32 %v394, 2147483648
    %v407 = vor.u32 1.1754944e-38, %v406
    %v408 = vsel %vm405, %v407, %v403
    %v409 = vmul.f32 1.0, %v408
    %v410 = vtanh.pop %v388
    %v411 = vmul.f32 %v409, %v333
    %413 = vrot.lane.b32.xlu0 %v410, 64
    %v414 = vpop.permute.xlu0 %413
    %v416 = vmul.f32 %v409, %v414
    %418 = vrot.lane.b32.xlu0 %v416, 32
    %v419 = vpop.permute.xlu0 %418
    %v421 = vadd.f32 %v411, %v419
    %v422 = vtanh.pop %v421
    %424 = vrot.lane.b32.xlu0 %v422, 64
    %v425 = vpop.permute.xlu0 %424
    %v427 = vmul.f32 %v409, %v425
    %v429 = vrot.slane %v427, 1
    %v430 = vperm.slane %v427, 0
    %v431 = vperm.slane %v429, 0
    %432 = vrot.lane.b32.xlu0 %v430, 32
    %v433 = vpop.permute.xlu0 %432
    %434 = vrot.lane.b32.xlu0 %v431, 32
    %v435 = vpop.permute.xlu0 %434
    %438 = vst.msk [vmem:[%s5 + $0x3] sm:$0x1] %vm173, %v433
    %439 = vst.msk [vmem:[%s5 + $0xb] sm:$0x1] %vm173, %v435
    %v440 = vld [vmem:[%s0 + $0x4] sm:$0x1]
    %v441 = vld [vmem:[%s0 + $0xc] sm:$0x1]
    %v442 = vpack.c.bf16 %v440, %v440
    %v443 = vpack.c.bf16 %v441, %v441
    %v444 = vpack.c.bf16 %v427, %v427
    %v447 = vunpack.c.l.b16 %v442
    %v448 = vunpack.c.l.b16 %v443
    %v449 = vpack.c.b16 %v447, %v447
    %v450 = vpack.c.b16 %v448, %v448
    %v451 = vunpack.c.l.b16 %v449
    %v452 = vunpack.c.l.b16 %v450
    %v453 = vrot.slane %v452, 7
    %v454 = vsel %vm67, %v453, %v451
    %v455 = vpack.c.b16 %v454, %v454
    %v457 = vunpack.c.l.b16 %v444
    %v458 = vpack.c.b16 %v457, %v457
    %459 = vrot.lane.b32.xlu0 %v458, 64
    %v460 = vpop.permute.xlu0 %459
    %v463 = vsel %vm75, %v455, %v460
    %v464 = vsel %vm106, %v463, 0
    %466 = vmatpush.bf16.msra.mxu0 0
    %467 = vmatpush.bf16.msra.mxu0 0
    %468 = vmatpush.bf16.msra.mxu0 0
    %469 = vmatpush.bf16.msra.mxu0 0
    %470 = vmatpush.bf16.msra.mxu0 %v101
    %471 = vmatpush.bf16.msra.mxu0 %v100
    %472 = vmatpush.bf16.msra.mxu0 %v99
    %473 = vmatpush.bf16.msra.mxu0 %v98
    %474 = vmatmul.bf16.gmra.mxu0 %v464
    %v475 = vpop.f32.mrf.mxu0
    %v476 = vadd.f32 %v80, %v475
    %v477 = vpop.f32.mrf.mxu0
    %478 = vdwg.mxu0
    %v479 = vxor.u32 %v476, 2147483648
    %v480 = vmul.f32 %v479, 1.442695
    %v481 = vpow.pop %v480
    %v482 = vadd.f32 %v481, 1.0
    %v483 = vrcp.pop %v482
    %v484 = vmul.f32 %v482, %v483
    %v485 = vsub.f32 1.0, %v484
    %v486 = vmul.f32 %v483, %v485
    %v487 = vadd.f32 %v483, %v486
    %vm488 = vweird.f32 %v482
    %vm489 = vweird.f32 %v483
    %vm490 = vmor %vm488, %vm489
    %v491 = vsel %vm490, %v483, %v487
    %v492 = vand.u32 2147483647, %v482
    %vm493 = vcmp.eq.f32.partialorder %v492, 8.507059e+37
    %v494 = vand.u32 %v482, 2147483648
    %v495 = vor.u32 1.1754944e-38, %v494
    %v496 = vsel %vm493, %v495, %v491
    %v497 = vmul.f32 1.0, %v496
    %v498 = vtanh.pop %v476
    %v499 = vmul.f32 %v497, %v421
    %501 = vrot.lane.b32.xlu0 %v498, 64
    %v502 = vpop.permute.xlu0 %501
    %v504 = vmul.f32 %v497, %v502
    %506 = vrot.lane.b32.xlu0 %v504, 32
    %v507 = vpop.permute.xlu0 %506
    %v509 = vadd.f32 %v499, %v507
    %v510 = vtanh.pop %v509
    %512 = vrot.lane.b32.xlu0 %v510, 64
    %v513 = vpop.permute.xlu0 %512
    %v515 = vmul.f32 %v497, %v513
    %v517 = vrot.slane %v515, 1
    %v518 = vperm.slane %v515, 0
    %v519 = vperm.slane %v517, 0
    %520 = vrot.lane.b32.xlu0 %v518, 32
    %v521 = vpop.permute.xlu0 %520
    %522 = vrot.lane.b32.xlu0 %v519, 32
    %v523 = vpop.permute.xlu0 %522
    %526 = vst.msk [vmem:[%s5 + $0x4] sm:$0x1] %vm173, %v521
    %527 = vst.msk [vmem:[%s5 + $0xc] sm:$0x1] %vm173, %v523
    %v528 = vld [vmem:[%s0 + $0x5] sm:$0x1]
    %v529 = vld [vmem:[%s0 + $0xd] sm:$0x1]
    %v530 = vpack.c.bf16 %v528, %v528
    %v531 = vpack.c.bf16 %v529, %v529
    %v532 = vpack.c.bf16 %v515, %v515
    %v535 = vunpack.c.l.b16 %v530
    %v536 = vunpack.c.l.b16 %v531
    %v537 = vpack.c.b16 %v535, %v535
    %v538 = vpack.c.b16 %v536, %v536
    %v539 = vunpack.c.l.b16 %v537
    %v540 = vunpack.c.l.b16 %v538
    %v541 = vrot.slane %v540, 7
    %v542 = vsel %vm67, %v541, %v539
    %v543 = vpack.c.b16 %v542, %v542
    %v545 = vunpack.c.l.b16 %v532
    %v546 = vpack.c.b16 %v545, %v545
    %547 = vrot.lane.b32.xlu0 %v546, 64
    %v548 = vpop.permute.xlu0 %547
    %v551 = vsel %vm75, %v543, %v548
    %v552 = vsel %vm106, %v551, 0
    %554 = vmatpush.bf16.msra.mxu0 0
    %555 = vmatpush.bf16.msra.mxu0 0
    %556 = vmatpush.bf16.msra.mxu0 0
    %557 = vmatpush.bf16.msra.mxu0 0
    %558 = vmatpush.bf16.msra.mxu0 %v101
    %559 = vmatpush.bf16.msra.mxu0 %v100
    %560 = vmatpush.bf16.msra.mxu0 %v99
    %561 = vmatpush.bf16.msra.mxu0 %v98
    %562 = vmatmul.bf16.gmra.mxu0 %v552
    %v563 = vpop.f32.mrf.mxu0
    %v564 = vadd.f32 %v80, %v563
    %v565 = vpop.f32.mrf.mxu0
    %566 = vdwg.mxu0
    %v567 = vxor.u32 %v564, 2147483648
    %v568 = vmul.f32 %v567, 1.442695
    %v569 = vpow.pop %v568
    %v570 = vadd.f32 %v569, 1.0
    %v571 = vrcp.pop %v570
    %v572 = vmul.f32 %v570, %v571
    %v573 = vsub.f32 1.0, %v572
    %v574 = vmul.f32 %v571, %v573
    %v575 = vadd.f32 %v571, %v574
    %vm576 = vweird.f32 %v570
    %vm577 = vweird.f32 %v571
    %vm578 = vmor %vm576, %vm577
    %v579 = vsel %vm578, %v571, %v575
    %v580 = vand.u32 2147483647, %v570
    %vm581 = vcmp.eq.f32.partialorder %v580, 8.507059e+37
    %v582 = vand.u32 %v570, 2147483648
    %v583 = vor.u32 1.1754944e-38, %v582
    %v584 = vsel %vm581, %v583, %v579
    %v585 = vmul.f32 1.0, %v584
    %v586 = vtanh.pop %v564
    %v587 = vmul.f32 %v585, %v509
    %589 = vrot.lane.b32.xlu0 %v586, 64
    %v590 = vpop.permute.xlu0 %589
    %v592 = vmul.f32 %v585, %v590
    %594 = vrot.lane.b32.xlu0 %v592, 32
    %v595 = vpop.permute.xlu0 %594
    %v597 = vadd.f32 %v587, %v595
    %v598 = vtanh.pop %v597
    %600 = vrot.lane.b32.xlu0 %v598, 64
    %v601 = vpop.permute.xlu0 %600
    %v603 = vmul.f32 %v585, %v601
    %v605 = vrot.slane %v603, 1
    %v606 = vperm.slane %v603, 0
    %v607 = vperm.slane %v605, 0
    %608 = vrot.lane.b32.xlu0 %v606, 32
    %v609 = vpop.permute.xlu0 %608
    %610 = vrot.lane.b32.xlu0 %v607, 32
    %v611 = vpop.permute.xlu0 %610
    %614 = vst.msk [vmem:[%s5 + $0x5] sm:$0x1] %vm173, %v609
    %615 = vst.msk [vmem:[%s5 + $0xd] sm:$0x1] %vm173, %v611
    %v616 = vld [vmem:[%s0 + $0x6] sm:$0x1]
    %v617 = vld [vmem:[%s0 + $0xe] sm:$0x1]
    %v618 = vpack.c.bf16 %v616, %v616
    %v619 = vpack.c.bf16 %v617, %v617
    %v620 = vpack.c.bf16 %v603, %v603
    %v623 = vunpack.c.l.b16 %v618
    %v624 = vunpack.c.l.b16 %v619
    %v625 = vpack.c.b16 %v623, %v623
    %v626 = vpack.c.b16 %v624, %v624
    %v627 = vunpack.c.l.b16 %v625
    %v628 = vunpack.c.l.b16 %v626
    %v629 = vrot.slane %v628, 7
    %v630 = vsel %vm67, %v629, %v627
    %v631 = vpack.c.b16 %v630, %v630
    %v633 = vunpack.c.l.b16 %v620
    %v634 = vpack.c.b16 %v633, %v633
    %635 = vrot.lane.b32.xlu0 %v634, 64
    %v636 = vpop.permute.xlu0 %635
    %v639 = vsel %vm75, %v631, %v636
    %v640 = vsel %vm106, %v639, 0
    %642 = vmatpush.bf16.msra.mxu0 0
    %643 = vmatpush.bf16.msra.mxu0 0
    %644 = vmatpush.bf16.msra.mxu0 0
    %645 = vmatpush.bf16.msra.mxu0 0
    %646 = vmatpush.bf16.msra.mxu0 %v101
    %647 = vmatpush.bf16.msra.mxu0 %v100
    %648 = vmatpush.bf16.msra.mxu0 %v99
    %649 = vmatpush.bf16.msra.mxu0 %v98
    %650 = vmatmul.bf16.gmra.mxu0 %v640
    %v651 = vpop.f32.mrf.mxu0
    %v652 = vadd.f32 %v80, %v651
    %v653 = vpop.f32.mrf.mxu0
    %654 = vdwg.mxu0
    %v655 = vxor.u32 %v652, 2147483648
    %v656 = vmul.f32 %v655, 1.442695
    %v657 = vpow.pop %v656
    %v658 = vadd.f32 %v657, 1.0
    %v659 = vrcp.pop %v658
    %v660 = vmul.f32 %v658, %v659
    %v661 = vsub.f32 1.0, %v660
    %v662 = vmul.f32 %v659, %v661
    %v663 = vadd.f32 %v659, %v662
    %vm664 = vweird.f32 %v658
    %vm665 = vweird.f32 %v659
    %vm666 = vmor %vm664, %vm665
    %v667 = vsel %vm666, %v659, %v663
    %v668 = vand.u32 2147483647, %v658
    %vm669 = vcmp.eq.f32.partialorder %v668, 8.507059e+37
    %v670 = vand.u32 %v658, 2147483648
    %v671 = vor.u32 1.1754944e-38, %v670
    %v672 = vsel %vm669, %v671, %v667
    %v673 = vmul.f32 1.0, %v672
    %v674 = vtanh.pop %v652
    %v675 = vmul.f32 %v673, %v597
    %677 = vrot.lane.b32.xlu0 %v674, 64
    %v678 = vpop.permute.xlu0 %677
    %v680 = vmul.f32 %v673, %v678
    %682 = vrot.lane.b32.xlu0 %v680, 32
    %v683 = vpop.permute.xlu0 %682
    %v685 = vadd.f32 %v675, %v683
    %v686 = vtanh.pop %v685
    %688 = vrot.lane.b32.xlu0 %v686, 64
    %v689 = vpop.permute.xlu0 %688
    %v691 = vmul.f32 %v673, %v689
    %v693 = vrot.slane %v691, 1
    %v694 = vperm.slane %v691, 0
    %v695 = vperm.slane %v693, 0
    %696 = vrot.lane.b32.xlu0 %v694, 32
    %v697 = vpop.permute.xlu0 %696
    %698 = vrot.lane.b32.xlu0 %v695, 32
    %v699 = vpop.permute.xlu0 %698
    %702 = vst.msk [vmem:[%s5 + $0x6] sm:$0x1] %vm173, %v697
    %703 = vst.msk [vmem:[%s5 + $0xe] sm:$0x1] %vm173, %v699
    %704 = vrot.lane.b32.xlu0 %v691, 32
    %v705 = vpop.permute.xlu0 %704
    %vm707 = vcmask 254976
    %708 = vst.msk [vmem:[#allocation5] sm:$0x3] %vm707, %v705
    %710 = vrot.lane.b32.xlu0 %v685, 96
    %v711 = vpop.permute.xlu0 %710
    %713 = vst.msk [vmem:[#allocation6] sm:$0x3] %vm707, %v711
    // Predicated region
    $region26: #{tpu_custom_call.1} parent=1 // pred_check
      _
    $region27: #{tpu_custom_call.1} parent=1 // pred_check_branch
      %715 = sbr.rel (0) target = $region29
    $region28: #{tpu_custom_call.1} parent=1 // pred_region
      _
    $region29: #{tpu_custom_call.1} parent=1 // pred_fallthru
      _
    // Predicated region
    $region30: #{tpu_custom_call.1} parent=1 // pred_check
      _
    $region31: #{tpu_custom_call.1} parent=1 // pred_check_branch
      %717 = sbr.rel (0) target = $region33
    $region32: #{tpu_custom_call.1} parent=1 // pred_region
      %719 = vsyncadd [#allocation4], 0
      %s721 = sshll.u32 [#allocation5], 4
      %s722 = int_to_ptr.vmem [resolvable:$true] %s721
      %s723 = sshll.u32 %s6, 4
      %s724 = int_to_ptr.hbm [resolvable:$true] %s723
      %726 = dma.vmem_to_hbm [thread:$0]  %s722, 32, %s724, [#allocation4]
    $region33: #{tpu_custom_call.1} parent=1 // pred_fallthru
      _
    // Predicated region
    $region34: #{tpu_custom_call.1} parent=1 // pred_check
      _
    $region35: #{tpu_custom_call.1} parent=1 // pred_check_branch
      %728 = sbr.rel (0) target = $region37
    $region36: #{tpu_custom_call.1} parent=1 // pred_region
      %730 = vsyncadd [#allocation7], 0
      %s732 = sshll.u32 [#allocation6], 4
      %s733 = int_to_ptr.vmem [resolvable:$true] %s732
      %s734 = sshll.u32 %s7, 4
      %s735 = int_to_ptr.hbm [resolvable:$true] %s734
      %737 = dma.vmem_to_hbm [thread:$0]  %s733, 32, %s735, [#allocation7]
    $region37: #{tpu_custom_call.1} parent=1 // pred_fallthru
      _
    // Predicated region
    $region38: #{tpu_custom_call.1} parent=1 // pred_check
      _
    $region39: #{tpu_custom_call.1} parent=1 // pred_check_branch
      %739 = sbr.rel (0) target = $region41
    $region40: #{tpu_custom_call.1} parent=1 // pred_region
      _
    $region41: #{tpu_custom_call.1} parent=1 // pred_fallthru
      _
    // Predicated region
    $region42: #{tpu_custom_call.1} parent=1 // pred_check
      _
    $region43: #{tpu_custom_call.1} parent=1 // pred_check_branch
      %741 = sbr.rel (0) target = $region45
    $region44: #{tpu_custom_call.1} parent=1 // pred_region
      %743 = dma.done [#allocation4], 32
    $region45: #{tpu_custom_call.1} parent=1 // pred_fallthru
      _
    // Predicated region
    $region46: #{tpu_custom_call.1} parent=1 // pred_check
      _
    $region47: #{tpu_custom_call.1} parent=1 // pred_check_branch
      %745 = sbr.rel (0) target = $region49
    $region48: #{tpu_custom_call.1} parent=1 // pred_region
      %747 = dma.done [#allocation7], 32
    $region49: #{tpu_custom_call.1} parent=1 // pred_fallthru
      _
    %748 = vsyncpa [#allocation3], 1
    %749 = vsyncpa [#allocation4], 1
    %750 = vsyncpa [#allocation7], 1

</llo_original>
